<compile_context>
chip_gen: v5e
topology: v5e:2x2
jax: 0.10.0
libtpu: 0.0.40
codegen_flags: <defaults>
</compile_context>

<pallas_src>
import math
import functools

import jax
import jax.numpy as jnp
from jax.experimental import pallas as pl
from jax.experimental.pallas import tpu as pltpu


# --------------------------------------------------------------------------
# Kernel
# --------------------------------------------------------------------------
def lstm_cell_kernel(x_ref, h_ref, c_ref, wx_ref, wh_ref, b_ref,
                     hy_ref, cy_ref, acc_ref, *, nk_x):
    """One (tile_b, tile_h) output tile, accumulated over the K grid axis.

    Grid = (hidden tiles j, batch tiles i, K blocks k).  The first nk_x K
    blocks cover the input projection (x @ Wx), the remaining blocks cover
    the recurrent projection (hx @ Wh).

    x_ref  : (tile_b, tile_kx)     bf16
    h_ref  : (tile_b, tile_kh)     bf16
    c_ref  : (tile_b, tile_h)      f32   previous cell state tile
    wx_ref : (tile_kx, 4*tile_h)   bf16  gate slabs [i|f|g|o] contiguous
    wh_ref : (tile_kh, 4*tile_h)   bf16
    b_ref  : (1, 4*tile_h)         f32   fused bias (b_xh + b_hh)
    hy_ref : (tile_b, tile_h)
    cy_ref : (tile_b, tile_h)      f32
    acc_ref: (tile_b, 4*tile_h)    f32   gate pre-activation accumulator
    """
    k = pl.program_id(2)
    nk = pl.num_programs(2)
    th = hy_ref.shape[-1]

    @pl.when(k == 0)
    def _():
        acc_ref[...] = jnp.zeros_like(acc_ref)

    # Exactly one of the two branches fires per K block.
    @pl.when(k < nk_x)
    def _():
        acc_ref[...] += jnp.dot(x_ref[...], wx_ref[...],
                                preferred_element_type=jnp.float32)

    @pl.when(k >= nk_x)
    def _():
        acc_ref[...] += jnp.dot(h_ref[...], wh_ref[...],
                                preferred_element_type=jnp.float32)

    @pl.when(k == nk - 1)
    def _():
        gates = acc_ref[...] + b_ref[...]
        # Gate slabs are contiguous and lane-aligned within this tile.
        i_t = jax.nn.sigmoid(gates[:, 0 * th:1 * th])
        f_t = jax.nn.sigmoid(gates[:, 1 * th:2 * th])
        g_t = jnp.tanh(gates[:, 2 * th:3 * th])
        o_t = jax.nn.sigmoid(gates[:, 3 * th:4 * th])

        cx = c_ref[...].astype(jnp.float32)
        cy = f_t * cx + i_t * g_t
        hy = o_t * jnp.tanh(cy)

        cy_ref[...] = cy.astype(cy_ref.dtype)   # cy kept in f32
        hy_ref[...] = hy.astype(hy_ref.dtype)


# --------------------------------------------------------------------------
# Tiling helpers
# --------------------------------------------------------------------------
def _pick_tile(total, pref, align):
    """Largest tile <= pref that divides `total` and is a multiple of `align`,
    falling back to the full extent (full-dim blocks are always legal)."""
    if total <= pref:
        return total
    if total % align != 0:
        return total
    t = (min(pref, total) // align) * align
    while t >= align:
        if total % t == 0:
            return t
        t -= align
    return total


def _preferred_tile_h():
    """Bigger lane-dense tiles amortize per-grid-step overhead; keep the
    double-buffered (tile_k, 4*tile_h) weight blocks well inside VMEM."""
    try:
        vmem_cap = pltpu.get_tpu_info().vmem_capacity_bytes
    except Exception:
        vmem_cap = 64 << 20
    return 512 if vmem_cap >= (100 << 20) else 256   # v5e/v6e vs v7x / unknown


def _vmem_limit_bytes(tile_b, tile_h, tile_kx, tile_kh, act_bytes, hy_bytes):
    """Scoped-VMEM request sized to the actual double-buffered blocks."""
    dbl = 2  # BlockSpec double buffering
    w = (tile_kx + tile_kh) * 4 * tile_h * act_bytes * dbl       # Wx + Wh
    act = tile_b * (tile_kx + tile_kh) * act_bytes * dbl          # x + hx
    cxb = tile_b * tile_h * 4 * dbl                               # cx (f32)
    bia = 4 * tile_h * 4 * dbl                                    # bias
    out = tile_b * tile_h * (hy_bytes + 4) * dbl                  # hy + cy
    acc = tile_b * 4 * tile_h * 4                                 # scratch
    need = int((w + act + cxb + bia + out + acc) * 1.3) + (1 << 20)
    return int(min(max(need, 32 << 20), 96 << 20))


# --------------------------------------------------------------------------
# One-time parameter preparation (hoisted out of the per-call path)
# --------------------------------------------------------------------------
def prepare_lstm_params(wxh, bxh, whh, bhh, *, tile_h=None,
                        mxu_dtype=jnp.bfloat16):
    """Fold PyTorch-layout parameters into the kernel layout. Done ONCE.

    wxh : (4H, D), bxh : (4H,), whh : (4H, H), bhh : (4H,)
    Returns a dict with:
      wx : (D, 4H) mxu_dtype, wh : (H, 4H) mxu_dtype, b : (1, 4H) f32
      Columns permuted so that for each hidden tile j the four gate slabs
      [i|f|g|o] of width tile_h are contiguous.  tile_h is bundled so a
      mismatched layout cannot be used silently.
    """
    H4, D = wxh.shape
    H = H4 // 4
    if tile_h is None:
        tile_h = _pick_tile(H, _preferred_tile_h(), 128)
    assert H % tile_h == 0, "tile_h must divide hidden_size"
    nt = H // tile_h

    def permute_cols(w):  # (K, 4H) gate-major -> per-tile [i|f|g|o] layout
        K = w.shape[0]
        return (w.reshape(K, 4, nt, tile_h)
                 .transpose(0, 2, 1, 3)
                 .reshape(K, 4 * H))

    wx = permute_cols(wxh.T).astype(mxu_dtype)                 # (D, 4H)
    wh = permute_cols(whh.T).astype(mxu_dtype)                 # (H, 4H)
    b = permute_cols((bxh + bhh).reshape(1, 4 * H)).astype(jnp.float32)
    return dict(wx=wx, wh=wh, b=b, tile_h=tile_h)


# --------------------------------------------------------------------------
# Forward wrapper
# --------------------------------------------------------------------------
@functools.partial(jax.jit, static_argnames=("tile_h",))
def _lstm_cell_fwd(x, hx, cx, wx, wh, b, *, tile_h):
    B, D = x.shape
    H = hx.shape[1]
    assert wx.shape == (D, 4 * H) and wh.shape == (H, 4 * H)
    assert H % tile_h == 0

    mxu_dtype = wx.dtype
    xq = x.astype(mxu_dtype)
    hq = hx.astype(mxu_dtype)
    cxf = cx.astype(jnp.float32)

    tile_b = _pick_tile(B, 256, 16)        # bf16 sublane packing -> 16-aligned
    tile_kx = _pick_tile(D, 512, 128)      # K blocks over the input projection
    tile_kh = _pick_tile(H, 512, 128)      # K blocks over the recurrent proj.
    nk_x = D // tile_kx
    nk_h = H // tile_kh
    n_k = nk_x + nk_h
    n_h = H // tile_h
    n_b = B // tile_b

    # Grid: hidden tiles (megacore "parallel"), batch tiles, K blocks
    # (reduction, innermost, "arbitrary").
    grid = (n_h, n_b, n_k)

    # K-axis routing: the first nk_x blocks drive x@Wx, the rest hx@Wh.
    # Indices are clamped so a stream's block index stays constant while the
    # other stream is active -> no redundant re-DMA.
    x_idx = lambda j, i, k: (i, jnp.minimum(k, nk_x - 1))
    h_idx = lambda j, i, k: (i, jnp.maximum(k - nk_x, 0))
    wx_idx = lambda j, i, k: (jnp.minimum(k, nk_x - 1), j)
    wh_idx = lambda j, i, k: (jnp.maximum(k - nk_x, 0), j)

    vmem_limit = _vmem_limit_bytes(tile_b, tile_h, tile_kx, tile_kh,
                                   jnp.dtype(mxu_dtype).itemsize,
                                   jnp.dtype(x.dtype).itemsize)

    hy, cy = pl.pallas_call(
        functools.partial(lstm_cell_kernel, nk_x=nk_x),
        out_shape=(
            jax.ShapeDtypeStruct((B, H), x.dtype),      # hy: activation dtype
            jax.ShapeDtypeStruct((B, H), jnp.float32),  # cy: always f32
        ),
        grid=grid,
        in_specs=[
            pl.BlockSpec((tile_b, tile_kx), x_idx),                 # x
            pl.BlockSpec((tile_b, tile_kh), h_idx),                 # hx
            pl.BlockSpec((tile_b, tile_h), lambda j, i, k: (i, j)),  # cx
            pl.BlockSpec((tile_kx, 4 * tile_h), wx_idx),            # Wx
            pl.BlockSpec((tile_kh, 4 * tile_h), wh_idx),            # Wh
            pl.BlockSpec((1, 4 * tile_h), lambda j, i, k: (0, j)),  # bias
        ],
        out_specs=(
            pl.BlockSpec((tile_b, tile_h), lambda j, i, k: (i, j)),  # hy
            pl.BlockSpec((tile_b, tile_h), lambda j, i, k: (i, j)),  # cy
        ),
        scratch_shapes=[pltpu.VMEM((tile_b, 4 * tile_h), jnp.float32)],
        compiler_params=pltpu.CompilerParams(
            dimension_semantics=("parallel", "arbitrary", "arbitrary"),
            vmem_limit_bytes=vmem_limit),
    )(xq, hq, cxf, wx, wh, b)
    return hy, cy


def lstm_cell(x, hidden, params):
    """Module-equivalent forward. `hidden` is (hx, cx) or None (-> zeros).
    `params` comes from prepare_lstm_params (call it once, reuse)."""
    B = x.shape[0]
    H = params["wh"].shape[0]
    if hidden is None:
        hx = jnp.zeros((B, H), dtype=x.dtype)
        cx = jnp.zeros((B, H), dtype=x.dtype)
    else:
        hx, cx = hidden
    return _lstm_cell_fwd(x, hx, cx, params["wx"], params["wh"], params["b"],
                          tile_h=params["tile_h"])


# --------------------------------------------------------------------------
# Pure-JAX reference (PyTorch module semantics, f32)
# --------------------------------------------------------------------------
def reference_lstm_cell(x, hx, cx, wxh, bxh, whh, bhh):
    gates = x @ wxh.T + bxh + hx @ whh.T + bhh
    H = hx.shape[1]
    i_t = jax.nn.sigmoid(gates[:, 0 * H:1 * H])
    f_t = jax.nn.sigmoid(gates[:, 1 * H:2 * H])
    g_t = jnp.tanh(gates[:, 2 * H:3 * H])
    o_t = jax.nn.sigmoid(gates[:, 3 * H:4 * H])
    cy = cx * f_t + i_t * g_t
    hy = o_t * jnp.tanh(cy)
    return hy, cy


# --------------------------------------------------------------------------
# Test
# --------------------------------------------------------------------------
if __name__ == "__main__":
    B, D, H = 8, 16, 32

    key = jax.random.PRNGKey(0)
    kx, kh, kc, kw1, kb1, kw2, kb2 = jax.random.split(key, 7)

    x = jax.random.normal(kx, (B, D), dtype=jnp.float32)

    # Deterministic init: uniform(-std, std), std = 1/sqrt(hidden_size)
    std = 1.0 / math.sqrt(H)
    wxh = jax.random.uniform(kw1, (4 * H, D), minval=-std, maxval=std, dtype=jnp.float32)
    bxh = jax.random.uniform(kb1, (4 * H,), minval=-std, maxval=std, dtype=jnp.float32)
    whh = jax.random.uniform(kw2, (4 * H, H), minval=-std, maxval=std, dtype=jnp.float32)
    bhh = jax.random.uniform(kb2, (4 * H,), minval=-std, maxval=std, dtype=jnp.float32)

    # One-time parameter preparation (hoisted out of the per-call path).
    params = prepare_lstm_params(wxh, bxh, whh, bhh)

    # --- case 1: hidden=None (module default -> zero hx, cx) ---
    hy, cy = lstm_cell(x, None, params)
    jax.block_until_ready((hy, cy))
    hz = jnp.zeros((B, H), jnp.float32)
    hy_ref, cy_ref = reference_lstm_cell(x, hz, hz, wxh, bxh, whh, bhh)
    assert hy.shape == (B, H) and cy.shape == (B, H)
    assert cy.dtype == jnp.float32
    # bf16 MXU operands -> compare against f32 reference with bf16-scale tol.
    assert jnp.max(jnp.abs(hy - hy_ref)) < 2e-2
    assert jnp.max(jnp.abs(cy - cy_ref)) < 2e-2

    # --- case 2: explicit nonzero hidden state ---
    hx = jax.random.normal(kh, (B, H), dtype=jnp.float32) * 0.5
    cx = jax.random.normal(kc, (B, H), dtype=jnp.float32) * 0.5
    hy2, cy2 = lstm_cell(x, (hx, cx), params)
    jax.block_until_ready((hy2, cy2))
    hy2_ref, cy2_ref = reference_lstm_cell(x, hx, cx, wxh, bxh, whh, bhh)
    assert jnp.max(jnp.abs(hy2 - hy2_ref)) < 2e-2
    assert jnp.max(jnp.abs(cy2 - cy2_ref)) < 2e-2

    print("KERNEL_OK")
</pallas_src>

<mosaic_0001>
module attributes {stable_mosaic.version = 11 : i64} {
  func.func @lstm_cell_kernel(%arg0: i32, %arg1: i32, %arg2: i32, %arg3: memref<8x16xbf16, #tpu.memory_space<vmem>>, %arg4: memref<8x32xbf16, #tpu.memory_space<vmem>>, %arg5: memref<8x32xf32, #tpu.memory_space<vmem>>, %arg6: memref<16x128xbf16, #tpu.memory_space<vmem>>, %arg7: memref<32x128xbf16, #tpu.memory_space<vmem>>, %arg8: memref<1x128xf32, #tpu.memory_space<vmem>>, %arg9: memref<8x32xf32, #tpu.memory_space<vmem>>, %arg10: memref<8x32xf32, #tpu.memory_space<vmem>>, %arg11: memref<8x128xf32, #tpu.memory_space<vmem>>) attributes {dimension_semantics = [#tpu.dimension_semantics<parallel>, #tpu.dimension_semantics<arbitrary>, #tpu.dimension_semantics<arbitrary>], iteration_bounds = array<i64: 1, 1, 2>, scalar_prefetch = 0 : i64, scratch_operands = 1 : i64, tpu.core_type = #tpu.core_type<tc>, window_params = [{transform_indices = @transform_0, window_bounds = array<i64: 8, 16>}, {transform_indices = @transform_1, window_bounds = array<i64: 8, 32>}, {transform_indices = @transform_2, window_bounds = array<i64: 8, 32>}, {transform_indices = @transform_3, window_bounds = array<i64: 16, 128>}, {transform_indices = @transform_4, window_bounds = array<i64: 32, 128>}, {transform_indices = @transform_5, window_bounds = array<i64: 1, 128>}, {transform_indices = @transform_6, window_bounds = array<i64: 8, 32>}, {transform_indices = @transform_7, window_bounds = array<i64: 8, 32>}]} {
    %c0_i32 = arith.constant 0 : i32
    %0 = arith.cmpi eq, %arg2, %c0_i32 : i32
    %1 = arith.extui %0 : i1 to i32
    %c0_i32_0 = arith.constant 0 : i32
    %2 = arith.cmpi ne, %1, %c0_i32_0 : i32
    scf.if %2 {
      %cst = arith.constant 0.000000e+00 : f32
      %12 = vector.broadcast %cst : f32 to vector<8x128xf32>
      %c0 = arith.constant 0 : index
      %c0_6 = arith.constant 0 : index
      %13 = vector.load %arg11[%c0, %c0_6] : memref<8x128xf32, #tpu.memory_space<vmem>>, vector<8x128xf32>
      tpu.vector_store %arg11[%c0, %c0_6], %12 {strides = array<i32>} : memref<8x128xf32, #tpu.memory_space<vmem>>, vector<8x128xf32>,
    } else {
    }
    %c1_i32 = arith.constant 1 : i32
    %3 = arith.cmpi slt, %arg2, %c1_i32 : i32
    %4 = arith.extui %3 : i1 to i32
    %c0_i32_1 = arith.constant 0 : i32
    %5 = arith.cmpi ne, %4, %c0_i32_1 : i32
    scf.if %5 {
      %c0 = arith.constant 0 : index
      %c0_6 = arith.constant 0 : index
      %12 = vector.load %arg11[%c0, %c0_6] : memref<8x128xf32, #tpu.memory_space<vmem>>, vector<8x128xf32>
      %c0_7 = arith.constant 0 : index
      %c0_8 = arith.constant 0 : index
      %13 = vector.load %arg3[%c0_7, %c0_8] : memref<8x16xbf16, #tpu.memory_space<vmem>>, vector<8x16xbf16>
      %c0_9 = arith.constant 0 : index
      %c0_10 = arith.constant 0 : index
      %14 = vector.load %arg6[%c0_9, %c0_10] : memref<16x128xbf16, #tpu.memory_space<vmem>>, vector<16x128xbf16>
      %cst = arith.constant dense<0.000000e+00> : vector<8x128xf32>
      %15 = tpu.matmul %13, %14, %cst {dimension_numbers = #tpu.dot_dimension_numbers<[1], [0], [0], [1], [0, 0, 1, 1], [], []>} : vector<8x16xbf16>, vector<16x128xbf16>, vector<8x128xf32> -> vector<8x128xf32>
      %16 = arith.addf %12, %15 : vector<8x128xf32>
      %c0_11 = arith.constant 0 : index
      %c0_12 = arith.constant 0 : index
      %17 = vector.load %arg11[%c0_11, %c0_12] : memref<8x128xf32, #tpu.memory_space<vmem>>, vector<8x128xf32>
      tpu.vector_store %arg11[%c0_11, %c0_12], %16 {strides = array<i32>} : memref<8x128xf32, #tpu.memory_space<vmem>>, vector<8x128xf32>,
    } else {
    }
    %c1_i32_2 = arith.constant 1 : i32
    %6 = arith.cmpi sge, %arg2, %c1_i32_2 : i32
    %7 = arith.extui %6 : i1 to i32
    %c0_i32_3 = arith.constant 0 : i32
    %8 = arith.cmpi ne, %7, %c0_i32_3 : i32
    scf.if %8 {
      %c0 = arith.constant 0 : index
      %c0_6 = arith.constant 0 : index
      %12 = vector.load %arg11[%c0, %c0_6] : memref<8x128xf32, #tpu.memory_space<vmem>>, vector<8x128xf32>
      %c0_7 = arith.constant 0 : index
      %c0_8 = arith.constant 0 : index
      %13 = vector.load %arg4[%c0_7, %c0_8] : memref<8x32xbf16, #tpu.memory_space<vmem>>, vector<8x32xbf16>
      %c0_9 = arith.constant 0 : index
      %c0_10 = arith.constant 0 : index
      %14 = vector.load %arg7[%c0_9, %c0_10] : memref<32x128xbf16, #tpu.memory_space<vmem>>, vector<32x128xbf16>
      %cst = arith.constant dense<0.000000e+00> : vector<8x128xf32>
      %15 = tpu.matmul %13, %14, %cst {dimension_numbers = #tpu.dot_dimension_numbers<[1], [0], [0], [1], [0, 0, 1, 1], [], []>} : vector<8x32xbf16>, vector<32x128xbf16>, vector<8x128xf32> -> vector<8x128xf32>
      %16 = arith.addf %12, %15 : vector<8x128xf32>
      %c0_11 = arith.constant 0 : index
      %c0_12 = arith.constant 0 : index
      %17 = vector.load %arg11[%c0_11, %c0_12] : memref<8x128xf32, #tpu.memory_space<vmem>>, vector<8x128xf32>
      tpu.vector_store %arg11[%c0_11, %c0_12], %16 {strides = array<i32>} : memref<8x128xf32, #tpu.memory_space<vmem>>, vector<8x128xf32>,
    } else {
    }
    %c1_i32_4 = arith.constant 1 : i32
    %9 = arith.cmpi eq, %arg2, %c1_i32_4 : i32
    %10 = arith.extui %9 : i1 to i32
    %c0_i32_5 = arith.constant 0 : i32
    %11 = arith.cmpi ne, %10, %c0_i32_5 : i32
    scf.if %11 {
      %c0 = arith.constant 0 : index
      %c0_6 = arith.constant 0 : index
      %12 = vector.load %arg11[%c0, %c0_6] : memref<8x128xf32, #tpu.memory_space<vmem>>, vector<8x128xf32>
      %c0_7 = arith.constant 0 : index
      %c0_8 = arith.constant 0 : index
      %13 = vector.load %arg8[%c0_7, %c0_8] : memref<1x128xf32, #tpu.memory_space<vmem>>, vector<1x128xf32>
      %14 = vector.broadcast %13 : vector<1x128xf32> to vector<8x128xf32>
      %15 = arith.addf %12, %14 : vector<8x128xf32>
      %16 = vector.extract_strided_slice %15 {offsets = [0, 0], sizes = [8, 32], strides = [1, 1]} : vector<8x128xf32> to vector<8x32xf32>
      %17 = arith.negf %16 : vector<8x32xf32>
      %18 = math.exp %17 : vector<8x32xf32>
      %cst = arith.constant 1.000000e+00 : f32
      %19 = vector.broadcast %cst : f32 to vector<8x32xf32>
      %20 = arith.addf %19, %18 : vector<8x32xf32>
      %21 = arith.divf %19, %20 : vector<8x32xf32>
      %22 = vector.extract_strided_slice %15 {offsets = [0, 32], sizes = [8, 32], strides = [1, 1]} : vector<8x128xf32> to vector<8x32xf32>
      %23 = arith.negf %22 : vector<8x32xf32>
      %24 = math.exp %23 : vector<8x32xf32>
      %cst_9 = arith.constant 1.000000e+00 : f32
      %25 = vector.broadcast %cst_9 : f32 to vector<8x32xf32>
      %26 = arith.addf %25, %24 : vector<8x32xf32>
      %27 = arith.divf %25, %26 : vector<8x32xf32>
      %28 = vector.extract_strided_slice %15 {offsets = [0, 64], sizes = [8, 32], strides = [1, 1]} : vector<8x128xf32> to vector<8x32xf32>
      %29 = math.tanh %28 : vector<8x32xf32>
      %30 = vector.extract_strided_slice %15 {offsets = [0, 96], sizes = [8, 32], strides = [1, 1]} : vector<8x128xf32> to vector<8x32xf32>
      %31 = arith.negf %30 : vector<8x32xf32>
      %32 = math.exp %31 : vector<8x32xf32>
      %cst_10 = arith.constant 1.000000e+00 : f32
      %33 = vector.broadcast %cst_10 : f32 to vector<8x32xf32>
      %34 = arith.addf %33, %32 : vector<8x32xf32>
      %35 = arith.divf %33, %34 : vector<8x32xf32>
      %c0_11 = arith.constant 0 : index
      %c0_12 = arith.constant 0 : index
      %36 = vector.load %arg5[%c0_11, %c0_12] : memref<8x32xf32, #tpu.memory_space<vmem>>, vector<8x32xf32>
      %37 = arith.mulf %27, %36 : vector<8x32xf32>
      %38 = arith.mulf %21, %29 : vector<8x32xf32>
      %39 = arith.addf %37, %38 : vector<8x32xf32>
      %40 = math.tanh %39 : vector<8x32xf32>
      %41 = arith.mulf %35, %40 : vector<8x32xf32>
      %c0_13 = arith.constant 0 : index
      %c0_14 = arith.constant 0 : index
      %42 = vector.load %arg10[%c0_13, %c0_14] : memref<8x32xf32, #tpu.memory_space<vmem>>, vector<8x32xf32>
      tpu.vector_store %arg10[%c0_13, %c0_14], %39 {strides = array<i32>} : memref<8x32xf32, #tpu.memory_space<vmem>>, vector<8x32xf32>,
      %c0_15 = arith.constant 0 : index
      %c0_16 = arith.constant 0 : index
      %43 = vector.load %arg9[%c0_15, %c0_16] : memref<8x32xf32, #tpu.memory_space<vmem>>, vector<8x32xf32>
      tpu.vector_store %arg9[%c0_15, %c0_16], %41 {strides = array<i32>} : memref<8x32xf32, #tpu.memory_space<vmem>>, vector<8x32xf32>,
    } else {
    }
    return
  }
  func.func @transform_0(%arg0: i32, %arg1: i32, %arg2: i32) -> (i32, i32) {
    %c0_i32 = arith.constant 0 : i32
    %0 = arith.minsi %arg2, %c0_i32 : i32
    %c0_i32_0 = arith.constant 0 : i32
    return %arg1, %0 : i32, i32
  }
  func.func @transform_1(%arg0: i32, %arg1: i32, %arg2: i32) -> (i32, i32) {
    %c1_i32 = arith.constant 1 : i32
    %0 = arith.subi %arg2, %c1_i32 : i32
    %c0_i32 = arith.constant 0 : i32
    %1 = arith.maxsi %0, %c0_i32 : i32
    %c0_i32_0 = arith.constant 0 : i32
    return %arg1, %1 : i32, i32
  }
  func.func @transform_2(%arg0: i32, %arg1: i32, %arg2: i32) -> (i32, i32) {
    %c0_i32 = arith.constant 0 : i32
    return %arg1, %arg0 : i32, i32
  }
  func.func @transform_3(%arg0: i32, %arg1: i32, %arg2: i32) -> (i32, i32) {
    %c0_i32 = arith.constant 0 : i32
    %0 = arith.minsi %arg2, %c0_i32 : i32
    %c0_i32_0 = arith.constant 0 : i32
    return %0, %arg0 : i32, i32
  }
  func.func @transform_4(%arg0: i32, %arg1: i32, %arg2: i32) -> (i32, i32) {
    %c1_i32 = arith.constant 1 : i32
    %0 = arith.subi %arg2, %c1_i32 : i32
    %c0_i32 = arith.constant 0 : i32
    %1 = arith.maxsi %0, %c0_i32 : i32
    %c0_i32_0 = arith.constant 0 : i32
    return %1, %arg0 : i32, i32
  }
  func.func @transform_5(%arg0: i32, %arg1: i32, %arg2: i32) -> (i32, i32) {
    %c0_i32 = arith.constant 0 : i32
    %c0_i32_0 = arith.constant 0 : i32
    return %c0_i32, %arg0 : i32, i32
  }
  func.func @transform_6(%arg0: i32, %arg1: i32, %arg2: i32) -> (i32, i32) {
    %c0_i32 = arith.constant 0 : i32
    return %arg1, %arg0 : i32, i32
  }
  func.func @transform_7(%arg0: i32, %arg1: i32, %arg2: i32) -> (i32, i32) {
    %c0_i32 = arith.constant 0 : i32
    return %arg1, %arg0 : i32, i32
  }
}

</mosaic_0001>

<llo_original>
// kernel: _lstm_cell_fwd.1
$region0: #{_lstm_cell_fwd.1}
  #allocation0 [shape = 'u32[]', space=smem, size = 0x4, offset = 0x4, fixed_abs, tag = 'smem constant byte address 0x4 - core index']
  #allocation1 [shape = 'u32[72,128]{1,0:T(1,128)}', space=vmem, size = 0x9000, scoped, tag = 'internal scratch']
  #allocation2 [shape = 'f32[8,128]{1,0:T(8,128)}', space=vmem, size = 0x1000, scoped, tag = 'scratch operand']
  %s0 = inlined_call_operand.vmem [shape: bf16[8,16], index: 0, kind: input, shape index: {}]
  %s1 = inlined_call_operand.vmem [shape: bf16[8,32], index: 1, kind: input, shape index: {}]
  %s2 = inlined_call_operand.hbm [shape: f32[8,32], index: 2, kind: input, shape index: {}]
  %s3 = inlined_call_operand.hbm [shape: bf16[16,128], index: 3, kind: input, shape index: {}]
  %s4 = inlined_call_operand.vmem [shape: bf16[32,128], index: 4, kind: input, shape index: {}]
  %s5 = inlined_call_operand.vmem [shape: f32[1,128], index: 5, kind: input, shape index: {}]
  %s6 = inlined_call_operand.hbm [shape: f32[8,32], index: 6, kind: output, shape index: {0}]
  %s7 = inlined_call_operand.hbm [shape: f32[8,32], index: 7, kind: output, shape index: {1}]
  %8 = xla_tuple %s6, %s7
  %s9 = sld [smem:[#allocation0]]
  $region89: #{_lstm_cell_fwd.1} parent=0
    _
  %s11 = ssub.s32 1, %s9
  %s12 = scalar_select 0, %s11, %s9
  $region1: #{_lstm_cell_fwd.1} parent=0
    #allocation3 [shape = 'u8[4096]{0}', space=vmem, size = 0x1000, scoped, tag = 'input window, operand 2, single buffered']
    #allocation4 [shape = 's32[2]{0}', space=sflag, size = 0x8, scoped, tag = 'scoped memory for _lstm_cell_fwd.1']
    #allocation5 [shape = 's32[2]{0}', space=sflag, size = 0x8, scoped, tag = 'scoped memory for _lstm_cell_fwd.1']
    #allocation6 [shape = 'u8[8192]{0}', space=vmem, size = 0x2000, scoped, tag = 'input window, operand 3']
    #allocation7 [shape = 's32[2]{0}', space=sflag, size = 0x8, scoped, tag = 'scoped memory for _lstm_cell_fwd.1']
    #allocation8 [shape = 'u8[4096]{0}', space=vmem, size = 0x1000, scoped, tag = 'output window, operand 0, single buffered']
    #allocation9 [shape = 'u8[4096]{0}', space=vmem, size = 0x1000, scoped, tag = 'output window, operand 1, single buffered']
    #allocation10 [shape = 's32[1]{0}', space=sflag, size = 0x4, scoped, tag = 'scoped memory for _lstm_cell_fwd.1']
    %13 = vsyncpa [#allocation4], 0
    %14 = vsyncpa [#allocation7], 0
    %s15 = scalar_lea.sflag [#allocation7], 1
    %16 = vsyncpa %s15, 0
    %17 = vsyncpa [#allocation5], 0
    %18 = vsyncpa [#allocation10], 0
    loop: start=0, step=1, limit=4
    $region2: #{_lstm_cell_fwd.1} parent=1 // loop_pre_header
      _
    $region3: #{_lstm_cell_fwd.1} parent=1 // loop_header
      %s20 = sphi 0, %s24
      %p21 = scmp.ge.s32.totalorder %s20, 4
      %s27 = sphi 0, %s46
      %s28 = sphi 0, %s42
      %s29 = sphi 0, %s38
      %s30 = sphi 0, %s27
      %s31 = sphi 0, %s28
      %s32 = sphi 0, %s29
      %s33 = sphi 0, %s30
      %s34 = sphi 0, %s31
      %s35 = sphi 0, %s32
      %s55 = sphi 0, %s57
      %s58 = sphi 0, %s55
      %s59 = sphi 0, %s58
      %s75 = sphi 0, %s59
      %s89 = sphi 0, %s91
      %s92 = sphi 0, %s89
      %s93 = sphi 0, %s92
      %s109 = sphi 0, %s93
      %s117 = sphi 0, %s119
      %s120 = sphi 0, %s117
      %s121 = sphi 0, %s120
      %s137 = sphi 0, %s121
      %s149 = sphi 0, %s151
      %s152 = sphi 0, %s149
      %s153 = sphi 0, %s152
      %s169 = sphi 0, %s153
      %s183 = sphi 0, %s185
      %s186 = sphi 0, %s183
      %s187 = sphi 0, %s186
      %s203 = sphi 0, %s187
      %s209 = sphi 0, %s211
      %s212 = sphi 0, %s209
      %s213 = sphi 0, %s212
      %s229 = sphi 0, %s213
      %s237 = sphi 0, %s239
      %s240 = sphi 0, %s237
      %s241 = sphi 0, %s240
      %s257 = sphi 0, %s241
      %s265 = sphi 0, %s267
      %s268 = sphi 0, %s265
      %s269 = sphi 0, %s268
      %s285 = sphi 0, %s269
    $region4: #{_lstm_cell_fwd.1} parent=1 // loop_header_branch
      %23 = sbr.rel (%p21) target = $region8
    $region5: #{_lstm_cell_fwd.1} parent=1 // loop_body
      %s25 = ssub.s32 %s20, 1
      %s26 = ssub.s32 %s20, 2
      %s36 = sadd.s32 1, %s29
      %p37 = scmp.ge.s32.totalorder %s36, 2
      %s38 = scalar_select %p37, 0, %s36
      %s39 = sadd.s32 1, %s28
      %s40 = scalar_select %p37, %s39, %s28
      %p41 = scmp.ge.s32.totalorder %s40, 1
      %s42 = scalar_select %p41, 0, %s40
      %s43 = sadd.s32 1, %s27
      %s44 = scalar_select %p41, %s43, %s27
      %p45 = scmp.ge.s32.totalorder %s44, 1
      %s46 = scalar_select %p45, 0, %s44
      %p47 = scmp.lt.s32.totalorder %s29, 0
      %s48 = scalar_select %p47, %s29, 0
      %p49 = scmp.lt.s32.totalorder %s38, 0
      %s50 = scalar_select %p49, %s38, 0
      %s51 = ssub.s32 %s28, %s42
      %s52 = ssub.s32 %s48, %s50
      %s53 = sor.u32 %s51, %s52
      %p54 = scmp.eq.s32.totalorder %s53, 0
      %s56 = sadd.s32 %s55, 1
      %s57 = scalar_select %p54, %s55, %s56
      %p60 = pneg %p54
      %p61 = scmp.eq.s32.totalorder %s20, 1
      %p62 = por %p60, %p61
      %p63 = scmp.ne.s32.totalorder %s55, %s58
      %p64 = scmp.eq.s32.totalorder %s20, 0
      %p65 = por %p63, %p64
      %p66 = scmp.ne.s32.totalorder %s55, %s58
      %p67 = scmp.eq.s32.totalorder %s25, 1
      %p68 = por %p66, %p67
      %p69 = scmp.ne.s32.totalorder %s58, %s59
      %p70 = scmp.eq.s32.totalorder %s25, 0
      %p71 = por %p69, %p70
      %p72 = scmp.ne.s32.totalorder %s58, %s59
      %p73 = scmp.eq.s32.totalorder %s26, 1
      %p74 = por %p72, %p73
      %p76 = scmp.ne.s32.totalorder %s59, %s75
      %p77 = scmp.eq.s32.totalorder %s26, 0
      %p78 = por %p76, %p77
      %s79 = ssub.s32 %s29, 1
      %p80 = scmp.gt.s32.totalorder %s79, 0
      %s81 = scalar_select %p80, %s79, 0
      %s82 = ssub.s32 %s38, 1
      %p83 = scmp.gt.s32.totalorder %s82, 0
      %s84 = scalar_select %p83, %s82, 0
      %s85 = ssub.s32 %s28, %s42
      %s86 = ssub.s32 %s81, %s84
      %s87 = sor.u32 %s85, %s86
      %p88 = scmp.eq.s32.totalorder %s87, 0
      %s90 = sadd.s32 %s89, 1
      %s91 = scalar_select %p88, %s89, %s90
      %p94 = pneg %p88
      %p95 = scmp.eq.s32.totalorder %s20, 1
      %p96 = por %p94, %p95
      %p97 = scmp.ne.s32.totalorder %s89, %s92
      %p98 = scmp.eq.s32.totalorder %s20, 0
      %p99 = por %p97, %p98
      %p100 = scmp.ne.s32.totalorder %s89, %s92
      %p101 = scmp.eq.s32.totalorder %s25, 1
      %p102 = por %p100, %p101
      %p103 = scmp.ne.s32.totalorder %s92, %s93
      %p104 = scmp.eq.s32.totalorder %s25, 0
      %p105 = por %p103, %p104
      %p106 = scmp.ne.s32.totalorder %s92, %s93
      %p107 = scmp.eq.s32.totalorder %s26, 1
      %p108 = por %p106, %p107
      %p110 = scmp.ne.s32.totalorder %s93, %s109
      %p111 = scmp.eq.s32.totalorder %s26, 0
      %p112 = por %p110, %p111
      %s113 = ssub.s32 %s28, %s42
      %s114 = ssub.s32 %s27, %s46
      %s115 = sor.u32 %s113, %s114
      %p116 = scmp.eq.s32.totalorder %s115, 0
      %s118 = sadd.s32 %s117, 1
      %s119 = scalar_select %p116, %s117, %s118
      %p122 = pneg %p116
      %p123 = scmp.eq.s32.totalorder %s20, 1
      %p124 = por %p122, %p123
      %p125 = scmp.ne.s32.totalorder %s117, %s120
      %p126 = scmp.eq.s32.totalorder %s20, 0
      %p127 = por %p125, %p126
      %p128 = scmp.ne.s32.totalorder %s117, %s120
      %p129 = scmp.eq.s32.totalorder %s25, 1
      %p130 = por %p128, %p129
      %p131 = scmp.ne.s32.totalorder %s120, %s121
      %p132 = scmp.eq.s32.totalorder %s25, 0
      %p133 = por %p131, %p132
      %p134 = scmp.ne.s32.totalorder %s120, %s121
      %p135 = scmp.eq.s32.totalorder %s26, 1
      %p136 = por %p134, %p135
      %p138 = scmp.ne.s32.totalorder %s121, %s137
      %p139 = scmp.eq.s32.totalorder %s26, 0
      %p140 = por %p138, %p139
      %p141 = scmp.lt.s32.totalorder %s29, 0
      %s142 = scalar_select %p141, %s29, 0
      %p143 = scmp.lt.s32.totalorder %s38, 0
      %s144 = scalar_select %p143, %s38, 0
      %s145 = ssub.s32 %s142, %s144
      %s146 = ssub.s32 %s27, %s46
      %s147 = sor.u32 %s145, %s146
      %p148 = scmp.eq.s32.totalorder %s147, 0
      %s150 = sadd.s32 %s149, 1
      %s151 = scalar_select %p148, %s149, %s150
      %p154 = pneg %p148
      %p155 = scmp.eq.s32.totalorder %s20, 1
      %p156 = por %p154, %p155
      %p157 = scmp.ne.s32.totalorder %s149, %s152
      %p158 = scmp.eq.s32.totalorder %s20, 0
      %p159 = por %p157, %p158
      %p160 = scmp.ne.s32.totalorder %s149, %s152
      %p161 = scmp.eq.s32.totalorder %s25, 1
      %p162 = por %p160, %p161
      %p163 = scmp.ne.s32.totalorder %s152, %s153
      %p164 = scmp.eq.s32.totalorder %s25, 0
      %p165 = por %p163, %p164
      %p166 = scmp.ne.s32.totalorder %s152, %s153
      %p167 = scmp.eq.s32.totalorder %s26, 1
      %p168 = por %p166, %p167
      %p170 = scmp.ne.s32.totalorder %s153, %s169
      %p171 = scmp.eq.s32.totalorder %s26, 0
      %p172 = por %p170, %p171
      %s173 = ssub.s32 %s29, 1
      %p174 = scmp.gt.s32.totalorder %s173, 0
      %s175 = scalar_select %p174, %s173, 0
      %s176 = ssub.s32 %s38, 1
      %p177 = scmp.gt.s32.totalorder %s176, 0
      %s178 = scalar_select %p177, %s176, 0
      %s179 = ssub.s32 %s175, %s178
      %s180 = ssub.s32 %s27, %s46
      %s181 = sor.u32 %s179, %s180
      %p182 = scmp.eq.s32.totalorder %s181, 0
      %s184 = sadd.s32 %s183, 1
      %s185 = scalar_select %p182, %s183, %s184
      %p188 = pneg %p182
      %p189 = scmp.eq.s32.totalorder %s20, 1
      %p190 = por %p188, %p189
      %p191 = scmp.ne.s32.totalorder %s183, %s186
      %p192 = scmp.eq.s32.totalorder %s20, 0
      %p193 = por %p191, %p192
      %p194 = scmp.ne.s32.totalorder %s183, %s186
      %p195 = scmp.eq.s32.totalorder %s25, 1
      %p196 = por %p194, %p195
      %p197 = scmp.ne.s32.totalorder %s186, %s187
      %p198 = scmp.eq.s32.totalorder %s25, 0
      %p199 = por %p197, %p198
      %p200 = scmp.ne.s32.totalorder %s186, %s187
      %p201 = scmp.eq.s32.totalorder %s26, 1
      %p202 = por %p200, %p201
      %p204 = scmp.ne.s32.totalorder %s187, %s203
      %p205 = scmp.eq.s32.totalorder %s26, 0
      %p206 = por %p204, %p205
      %s207 = ssub.s32 %s27, %s46
      %p208 = scmp.eq.s32.totalorder %s207, 0
      %s210 = sadd.s32 %s209, 1
      %s211 = scalar_select %p208, %s209, %s210
      %p214 = pneg %p208
      %p215 = scmp.eq.s32.totalorder %s20, 1
      %p216 = por %p214, %p215
      %p217 = scmp.ne.s32.totalorder %s209, %s212
      %p218 = scmp.eq.s32.totalorder %s20, 0
      %p219 = por %p217, %p218
      %p220 = scmp.ne.s32.totalorder %s209, %s212
      %p221 = scmp.eq.s32.totalorder %s25, 1
      %p222 = por %p220, %p221
      %p223 = scmp.ne.s32.totalorder %s212, %s213
      %p224 = scmp.eq.s32.totalorder %s25, 0
      %p225 = por %p223, %p224
      %p226 = scmp.ne.s32.totalorder %s212, %s213
      %p227 = scmp.eq.s32.totalorder %s26, 1
      %p228 = por %p226, %p227
      %p230 = scmp.ne.s32.totalorder %s213, %s229
      %p231 = scmp.eq.s32.totalorder %s26, 0
      %p232 = por %p230, %p231
      %s233 = ssub.s32 %s28, %s42
      %s234 = ssub.s32 %s27, %s46
      %s235 = sor.u32 %s233, %s234
      %p236 = scmp.eq.s32.totalorder %s235, 0
      %s238 = sadd.s32 %s237, 1
      %s239 = scalar_select %p236, %s237, %s238
      %p242 = pneg %p236
      %p243 = scmp.eq.s32.totalorder %s20, 1
      %p244 = por %p242, %p243
      %p245 = scmp.ne.s32.totalorder %s237, %s240
      %p246 = scmp.eq.s32.totalorder %s20, 0
      %p247 = por %p245, %p246
      %p248 = scmp.ne.s32.totalorder %s237, %s240
      %p249 = scmp.eq.s32.totalorder %s25, 1
      %p250 = por %p248, %p249
      %p251 = scmp.ne.s32.totalorder %s240, %s241
      %p252 = scmp.eq.s32.totalorder %s25, 0
      %p253 = por %p251, %p252
      %p254 = scmp.ne.s32.totalorder %s240, %s241
      %p255 = scmp.eq.s32.totalorder %s26, 1
      %p256 = por %p254, %p255
      %p258 = scmp.ne.s32.totalorder %s241, %s257
      %p259 = scmp.eq.s32.totalorder %s26, 0
      %p260 = por %p258, %p259
      %s261 = ssub.s32 %s28, %s42
      %s262 = ssub.s32 %s27, %s46
      %s263 = sor.u32 %s261, %s262
      %p264 = scmp.eq.s32.totalorder %s263, 0
      %s266 = sadd.s32 %s265, 1
      %s267 = scalar_select %p264, %s265, %s266
      %p270 = pneg %p264
      %p271 = scmp.eq.s32.totalorder %s20, 1
      %p272 = por %p270, %p271
      %p273 = scmp.ne.s32.totalorder %s265, %s268
      %p274 = scmp.eq.s32.totalorder %s20, 0
      %p275 = por %p273, %p274
      %p276 = scmp.ne.s32.totalorder %s265, %s268
      %p277 = scmp.eq.s32.totalorder %s25, 1
      %p278 = por %p276, %p277
      %p279 = scmp.ne.s32.totalorder %s268, %s269
      %p280 = scmp.eq.s32.totalorder %s25, 0
      %p281 = por %p279, %p280
      %p282 = scmp.ne.s32.totalorder %s268, %s269
      %p283 = scmp.eq.s32.totalorder %s26, 1
      %p284 = por %p282, %p283
      %p286 = scmp.ne.s32.totalorder %s269, %s285
      %p287 = scmp.eq.s32.totalorder %s26, 0
      %p288 = por %p286, %p287
      %p289 = scmp.le.s32.totalorder 1, %s20
      %p290 = scmp.lt.s32.totalorder %s20, 3
      %p291 = pnand %p289, %p290
      %p292 = pneg %p291
      // Predicated region
      $region9: #{_lstm_cell_fwd.1} parent=5 // pred_check
        _
      $region10: #{_lstm_cell_fwd.1} parent=5 // pred_check_branch
        %294 = sbr.rel (%p291) target = $region12
      $region11: #{_lstm_cell_fwd.1} parent=5 // pred_region
        %s295 = ssub.s32 %s20, 1
        // Predicated region
        $region13: #{_lstm_cell_fwd.1} parent=11 // pred_check
          %p296 = pneg %p133
        $region14: #{_lstm_cell_fwd.1} parent=11 // pred_check_branch
          %298 = sbr.rel (%p296) target = $region16
        $region15: #{_lstm_cell_fwd.1} parent=11 // pred_region
          %300 = vsyncadd [#allocation4], 0
          %s301 = sadd.s32 %s30, %s31
          %s302 = smul.addr %s301, 8
          %s303 = scalar_lea.hbm %s2, %s302
          %s305 = sshll.u32 %s303, 4
          %s306 = int_to_ptr.hbm [resolvable:$true] %s305
          %s307 = sshll.u32 [#allocation3], 4
          %s308 = int_to_ptr.vmem [resolvable:$true] %s307
          %310 = dma.hbm_to_vmem [thread:$0]  %s306, 128, %s308, [#allocation4]
        $region16: #{_lstm_cell_fwd.1} parent=11 // pred_fallthru
          _
        // Predicated region
        $region17: #{_lstm_cell_fwd.1} parent=11 // pred_check
          %p311 = pneg %p225
        $region18: #{_lstm_cell_fwd.1} parent=11 // pred_check_branch
          %313 = sbr.rel (%p311) target = $region20
        $region19: #{_lstm_cell_fwd.1} parent=11 // pred_region
          %p314 = scmp.lt.s32.totalorder %s30, 0
          %s315 = scalar_select %p314, %s30, 0
          %s316 = scalar_lea.vmem %s5, %s315
        $region20: #{_lstm_cell_fwd.1} parent=11 // pred_fallthru
          _
      $region12: #{_lstm_cell_fwd.1} parent=5 // pred_fallthru
        _
      %p317 = scmp.lt.s32.totalorder %s20, 2
      // Predicated region
      $region21: #{_lstm_cell_fwd.1} parent=5 // pred_check
        %p318 = pneg %p317
      $region22: #{_lstm_cell_fwd.1} parent=5 // pred_check_branch
        %320 = sbr.rel (%p318) target = $region24
      $region23: #{_lstm_cell_fwd.1} parent=5 // pred_region
        // Predicated region
        $region25: #{_lstm_cell_fwd.1} parent=23 // pred_check
          %p321 = pneg %p65
        $region26: #{_lstm_cell_fwd.1} parent=23 // pred_check_branch
          %323 = sbr.rel (%p321) target = $region28
        $region27: #{_lstm_cell_fwd.1} parent=23 // pred_region
          %p324 = scmp.lt.s32.totalorder %s29, 0
          %s325 = scalar_select %p324, %s29, 0
          %p326 = scmp.lt.s32.totalorder %s28, 0
          %s327 = scalar_select %p326, %s28, 0
          %p328 = scmp.lt.s32.totalorder %s325, 0
          %s329 = scalar_select %p328, %s325, 0
          %s330 = sadd.s32 %s329, %s327
          %s331 = smul.addr %s330, 4
          %s332 = scalar_lea.vmem %s0, %s331
          %p333 = scmp.lt.s32.totalorder %s29, 0
          %s334 = scalar_select %p333, %s29, 0
        $region28: #{_lstm_cell_fwd.1} parent=23 // pred_fallthru
          _
        // Predicated region
        $region29: #{_lstm_cell_fwd.1} parent=23 // pred_check
          %p335 = pneg %p99
        $region30: #{_lstm_cell_fwd.1} parent=23 // pred_check_branch
          %337 = sbr.rel (%p335) target = $region32
        $region31: #{_lstm_cell_fwd.1} parent=23 // pred_region
          %s338 = ssub.s32 %s29, 1
          %p339 = scmp.gt.s32.totalorder %s338, 0
          %s340 = scalar_select %p339, %s338, 0
          %p341 = scmp.lt.s32.totalorder %s28, 0
          %s342 = scalar_select %p341, %s28, 0
          %p343 = scmp.lt.s32.totalorder %s340, 0
          %s344 = scalar_select %p343, %s340, 0
          %s345 = sadd.s32 %s344, %s342
          %s346 = smul.addr %s345, 4
          %s347 = scalar_lea.vmem %s1, %s346
          %s348 = ssub.s32 %s29, 1
          %p349 = scmp.gt.s32.totalorder %s348, 0
          %s350 = scalar_select %p349, %s348, 0
        $region32: #{_lstm_cell_fwd.1} parent=23 // pred_fallthru
          _
        // Predicated region
        $region33: #{_lstm_cell_fwd.1} parent=23 // pred_check
          %p351 = pneg %p159
        $region34: #{_lstm_cell_fwd.1} parent=23 // pred_check_branch
          %353 = sbr.rel (%p351) target = $region36
        $region35: #{_lstm_cell_fwd.1} parent=23 // pred_region
          %s354 = sand.u32 %s149, 1
          %s355 = scalar_lea.sflag [#allocation7], %s354
          %s356 = sand.u32 %s149, 1
          %s357 = smul.addr %s356, 8
          %s358 = scalar_lea.vmem [#allocation6], %s357
          %p359 = scmp.lt.s32.totalorder %s29, 0
          %s360 = scalar_select %p359, %s29, 0
          %s361 = smul.u32 2, %s360
          %363 = vsyncadd %s355, 0
          %s364 = sadd.s32 %s27, %s361
          %s365 = smul.addr %s364, 4
          %s366 = scalar_lea.hbm %s3, %s365
          %s367 = sshll.u32 %s366, 4
          %s368 = int_to_ptr.hbm [resolvable:$true] %s367
          %s369 = sshll.u32 %s358, 4
          %s370 = int_to_ptr.vmem [resolvable:$true] %s369
          %375 = dma.hbm_to_vmem [thread:$0]  %s368, 128, %s370, %s355, 64, 64, 4
        $region36: #{_lstm_cell_fwd.1} parent=23 // pred_fallthru
          _
        // Predicated region
        $region37: #{_lstm_cell_fwd.1} parent=23 // pred_check
          %p376 = pneg %p193
        $region38: #{_lstm_cell_fwd.1} parent=23 // pred_check_branch
          %378 = sbr.rel (%p376) target = $region40
        $region39: #{_lstm_cell_fwd.1} parent=23 // pred_region
          %s379 = ssub.s32 %s29, 1
          %p380 = scmp.gt.s32.totalorder %s379, 0
          %s381 = scalar_select %p380, %s379, 0
          %s382 = smul.u32 4, %s381
          %p383 = scmp.lt.s32.totalorder %s382, 3
          %s384 = scalar_select %p383, %s382, 3
          %p385 = scmp.lt.s32.totalorder %s27, 0
          %s386 = scalar_select %p385, %s27, 0
          %s387 = sadd.s32 %s386, %s384
          %s388 = smul.addr %s387, 4
          %s389 = scalar_lea.vmem %s4, %s388
          %s390 = ssub.s32 %s29, 1
          %p391 = scmp.gt.s32.totalorder %s390, 0
          %s392 = scalar_select %p391, %s390, 0
          %s393 = smul.u32 4, %s392
        $region40: #{_lstm_cell_fwd.1} parent=23 // pred_fallthru
          _
      $region24: #{_lstm_cell_fwd.1} parent=5 // pred_fallthru
        _
      %p394 = scmp.le.s32.totalorder 1, %s20
      %p395 = scmp.lt.s32.totalorder %s20, 3
      %p396 = pnand %p394, %p395
      %p397 = pneg %p396
      // Predicated region
      $region41: #{_lstm_cell_fwd.1} parent=5 // pred_check
        _
      $region42: #{_lstm_cell_fwd.1} parent=5 // pred_check_branch
        %399 = sbr.rel (%p396) target = $region44
      $region43: #{_lstm_cell_fwd.1} parent=5 // pred_region
        %s400 = ssub.s32 %s20, 1
        // Predicated region
        $region45: #{_lstm_cell_fwd.1} parent=43 // pred_check
          %p401 = pneg %p133
        $region46: #{_lstm_cell_fwd.1} parent=43 // pred_check_branch
          %403 = sbr.rel (%p401) target = $region48
        $region47: #{_lstm_cell_fwd.1} parent=43 // pred_region
          %405 = dma.done [#allocation4], 128
        $region48: #{_lstm_cell_fwd.1} parent=43 // pred_fallthru
          _
        %s406 = sand.u32 %s152, 1
        %s407 = scalar_lea.sflag [#allocation7], %s406
        %s408 = sand.u32 %s152, 1
        %s409 = smul.addr %s408, 8
        %s410 = scalar_lea.vmem [#allocation6], %s409
        // Predicated region
        $region49: #{_lstm_cell_fwd.1} parent=43 // pred_check
          %p411 = pneg %p165
        $region50: #{_lstm_cell_fwd.1} parent=43 // pred_check_branch
          %413 = sbr.rel (%p411) target = $region52
        $region51: #{_lstm_cell_fwd.1} parent=43 // pred_region
          %415 = dma.done %s407, 128
        $region52: #{_lstm_cell_fwd.1} parent=43 // pred_fallthru
          _
        %p416 = scmp.lt.s32.totalorder %s32, 0
        %s417 = scalar_select %p416, %s32, 0
        %p418 = scmp.lt.s32.totalorder %s31, 0
        %s419 = scalar_select %p418, %s31, 0
        %p420 = scmp.lt.s32.totalorder %s417, 0
        %s421 = scalar_select %p420, %s417, 0
        %s422 = sadd.s32 %s421, %s419
        %s423 = smul.addr %s422, 4
        %s424 = scalar_lea.vmem %s0, %s423
        %p425 = pneg %p71
        %p426 = pneg %p68
        %s427 = ssub.s32 %s32, 1
        %p428 = scmp.gt.s32.totalorder %s427, 0
        %s429 = scalar_select %p428, %s427, 0
        %p430 = scmp.lt.s32.totalorder %s31, 0
        %s431 = scalar_select %p430, %s31, 0
        %p432 = scmp.lt.s32.totalorder %s429, 0
        %s433 = scalar_select %p432, %s429, 0
        %s434 = sadd.s32 %s433, %s431
        %s435 = smul.addr %s434, 4
        %s436 = scalar_lea.vmem %s1, %s435
        %p437 = pneg %p105
        %p438 = pneg %p102
        %p439 = pneg %p133
        %p440 = pneg %p130
        %s441 = sand.u32 %s152, 1
        %s442 = scalar_lea.sflag [#allocation7], %s441
        %s443 = sand.u32 %s152, 1
        %s444 = smul.addr %s443, 8
        %s445 = scalar_lea.vmem [#allocation6], %s444
        %p446 = pneg %p165
        %p447 = pneg %p162
        %s448 = ssub.s32 %s32, 1
        %p449 = scmp.gt.s32.totalorder %s448, 0
        %s450 = scalar_select %p449, %s448, 0
        %s451 = smul.u32 4, %s450
        %p452 = scmp.lt.s32.totalorder %s451, 3
        %s453 = scalar_select %p452, %s451, 3
        %p454 = scmp.lt.s32.totalorder %s30, 0
        %s455 = scalar_select %p454, %s30, 0
        %s456 = sadd.s32 %s455, %s453
        %s457 = smul.addr %s456, 4
        %s458 = scalar_lea.vmem %s4, %s457
        %p459 = pneg %p199
        %p460 = pneg %p196
        %p461 = scmp.lt.s32.totalorder %s30, 0
        %s462 = scalar_select %p461, %s30, 0
        %s463 = scalar_lea.vmem %s5, %s462
        %p464 = pneg %p225
        %p465 = pneg %p222
        %p466 = pneg %p253
        %p467 = pneg %p250
        %p468 = pneg %p281
        %p469 = pneg %p278
        %p470 = scmp.lt.s32.totalorder %s32, 0
        %s471 = scalar_select %p470, %s32, 0
        %p472 = scmp.lt.s32.totalorder %s31, 0
        %s473 = scalar_select %p472, %s31, 0
        %p474 = scmp.lt.s32.totalorder %s471, 0
        %s475 = scalar_select %p474, %s471, 0
        %s476 = sadd.s32 %s475, %s473
        %s477 = smul.addr %s476, 4
        %s478 = scalar_lea.vmem %s0, %s477
        %p479 = scmp.lt.s32.totalorder %s32, 0
        %s480 = scalar_select %p479, %s32, 0
        %s481 = ssub.s32 %s32, 1
        %p482 = scmp.gt.s32.totalorder %s481, 0
        %s483 = scalar_select %p482, %s481, 0
        %p484 = scmp.lt.s32.totalorder %s31, 0
        %s485 = scalar_select %p484, %s31, 0
        %p486 = scmp.lt.s32.totalorder %s483, 0
        %s487 = scalar_select %p486, %s483, 0
        %s488 = sadd.s32 %s487, %s485
        %s489 = smul.addr %s488, 4
        %s490 = scalar_lea.vmem %s1, %s489
        %s491 = ssub.s32 %s32, 1
        %p492 = scmp.gt.s32.totalorder %s491, 0
        %s493 = scalar_select %p492, %s491, 0
        %p494 = scmp.lt.s32.totalorder %s32, 0
        %s495 = scalar_select %p494, %s32, 0
        %s496 = smul.u32 2, %s495
        %s497 = ssub.s32 %s32, 1
        %p498 = scmp.gt.s32.totalorder %s497, 0
        %s499 = scalar_select %p498, %s497, 0
        %s500 = smul.u32 4, %s499
        %p501 = scmp.lt.s32.totalorder %s500, 3
        %s502 = scalar_select %p501, %s500, 3
        %p503 = scmp.lt.s32.totalorder %s30, 0
        %s504 = scalar_select %p503, %s30, 0
        %s505 = sadd.s32 %s504, %s502
        %s506 = smul.addr %s505, 4
        %s507 = scalar_lea.vmem %s4, %s506
        %s508 = ssub.s32 %s32, 1
        %p509 = scmp.gt.s32.totalorder %s508, 0
        %s510 = scalar_select %p509, %s508, 0
        %s511 = smul.u32 4, %s510
        %p512 = scmp.lt.s32.totalorder %s30, 0
        %s513 = scalar_select %p512, %s30, 0
        %s514 = scalar_lea.vmem %s5, %s513
        %p516 = scmp.eq.s32.totalorder %s32, 0
        // Predicated region
        $region53: #{_lstm_cell_fwd.1} parent=43 // pred_check
          %p517 = pneg %p516
        $region54: #{_lstm_cell_fwd.1} parent=43 // pred_check_branch
          %519 = sbr.rel (%p517) target = $region56
        $region55: #{_lstm_cell_fwd.1} parent=43 // pred_region
          %520 = vst [vmem:[#allocation2] sm:$0xff] 0.0
        $region56: #{_lstm_cell_fwd.1} parent=43 // pred_fallthru
          _
        %p521 = scmp.lt.s32.totalorder %s32, 1
        // Predicated region
        $region57: #{_lstm_cell_fwd.1} parent=43 // pred_check
          %p522 = pneg %p521
        $region58: #{_lstm_cell_fwd.1} parent=43 // pred_check_branch
          %524 = sbr.rel (%p522) target = $region60
        $region59: #{_lstm_cell_fwd.1} parent=43 // pred_region
          %v525 = vld [vmem:[#allocation2] sm:$0xff]
          %v526 = vld [vmem:[%s478] sm:$0xf]
          %v527 = vld [vmem:[%s410] sm:$0xf]
          %v528 = vld [vmem:[%s410 + $0x4] sm:$0xf]
          %v531 = vunpack.c.l.b16 %v527
          %v532 = vunpack.c.l.b16 %v528
          %v533 = vpack.c.b16 %v532, %v531
          %vm535 = vcmask 130048
          %v537 = vsel %vm535, %v526, 0
          %539 = vmatpush.bf16.msra.mxu0 0
          %540 = vmatpush.bf16.msra.mxu0 0
          %541 = vmatpush.bf16.msra.mxu0 0
          %542 = vmatpush.bf16.msra.mxu0 0
          %543 = vmatpush.bf16.msra.mxu0 0
          %544 = vmatpush.bf16.msra.mxu0 0
          %545 = vmatpush.bf16.msra.mxu0 0
          %546 = vmatpush.bf16.msra.mxu0 %v533
          %547 = vmatmul.bf16.gmra.mxu0 %v537
          %v548 = vpop.f32.mrf.mxu0
          %v549 = vadd.f32 0.0, %v548
          %v550 = vpop.f32.mrf.mxu0
          %551 = vdwg.mxu0
          %v552 = vadd.f32 %v525, %v549
          %553 = vst [vmem:[#allocation2] sm:$0xff] %v552
        $region60: #{_lstm_cell_fwd.1} parent=43 // pred_fallthru
          _
        %p554 = scmp.ge.s32.totalorder %s32, 1
        // Predicated region
        $region61: #{_lstm_cell_fwd.1} parent=43 // pred_check
          %p555 = pneg %p554
        $region62: #{_lstm_cell_fwd.1} parent=43 // pred_check_branch
          %557 = sbr.rel (%p555) target = $region64
        $region63: #{_lstm_cell_fwd.1} parent=43 // pred_region
          %v558 = vld [vmem:[#allocation2] sm:$0xff]
          %v559 = vld [vmem:[%s490] sm:$0xf]
          %v560 = vld [vmem:[%s507] sm:$0xf]
          %v561 = vld [vmem:[%s507 + $0x4] sm:$0xf]
          %v562 = vld [vmem:[%s507 + $0x8] sm:$0xf]
          %v563 = vld [vmem:[%s507 + $0xc] sm:$0xf]
          %v568 = vunpack.c.l.b16 %v560
          %v569 = vunpack.c.l.b16 %v561
          %v570 = vunpack.c.l.b16 %v562
          %v571 = vunpack.c.l.b16 %v563
          %v572 = vpack.c.b16 %v569, %v568
          %v573 = vpack.c.b16 %v571, %v570
          %vm576 = vcmask 261120
          %v578 = vsel %vm576, %v559, 0
          %580 = vmatpush.bf16.msra.mxu0 0
          %581 = vmatpush.bf16.msra.mxu0 0
          %582 = vmatpush.bf16.msra.mxu0 0
          %583 = vmatpush.bf16.msra.mxu0 0
          %584 = vmatpush.bf16.msra.mxu0 0
          %585 = vmatpush.bf16.msra.mxu0 0
          %586 = vmatpush.bf16.msra.mxu0 %v573
          %587 = vmatpush.bf16.msra.mxu0 %v572
          %588 = vmatmul.bf16.gmra.mxu0 %v578
          %v589 = vpop.f32.mrf.mxu0
          %v590 = vadd.f32 0.0, %v589
          %v591 = vpop.f32.mrf.mxu0
          %592 = vdwg.mxu0
          %v593 = vadd.f32 %v558, %v590
          %594 = vst [vmem:[#allocation2] sm:$0xff] %v593
        $region64: #{_lstm_cell_fwd.1} parent=43 // pred_fallthru
          _
        %p595 = scmp.eq.s32.totalorder %s32, 1
        // Predicated region
        $region65: #{_lstm_cell_fwd.1} parent=43 // pred_check
          %p596 = pneg %p595
        $region66: #{_lstm_cell_fwd.1} parent=43 // pred_check_branch
          %598 = sbr.rel (%p596) target = $region68
        $region67: #{_lstm_cell_fwd.1} parent=43 // pred_region
          %v599 = vld [vmem:[#allocation2] sm:$0xff]
          %v600 = vld [vmem:[%s514] sm:$0x1]
          %v602 = vperm.slane %v600, 0
          %v604 = vadd.f32 %v599, %v602
          %v605 = vxor.u32 %v604, 2147483648
          %v606 = vmul.f32 %v605, 1.442695
          %v607 = vpow.pop %v606
          %v608 = vadd.f32 %v607, 1.0
          %v609 = vrcp.pop %v608
          %v610 = vmul.f32 %v608, %v609
          %v611 = vsub.f32 1.0, %v610
          %v612 = vmul.f32 %v609, %v611
          %v613 = vadd.f32 %v609, %v612
          %vm614 = vweird.f32 %v608
          %vm615 = vweird.f32 %v609
          %vm616 = vmor %vm614, %vm615
          %v617 = vsel %vm616, %v609, %v613
          %v618 = vand.u32 2147483647, %v608
          %vm619 = vcmp.eq.f32.partialorder %v618, 8.507059e+37
          %v620 = vand.u32 %v608, 2147483648
          %v621 = vor.u32 1.1754944e-38, %v620
          %v622 = vsel %vm619, %v621, %v617
          %v623 = vmul.f32 1.0, %v622
          %v624 = vtanh.pop %v604
          %v625 = vld [vmem:[#allocation3] sm:$0xff]
          %627 = vrot.lane.b32.xlu0 %v625, 32
          %v628 = vpop.permute.xlu0 %627
          %v630 = vmul.f32 %v623, %v628
          %632 = vrot.lane.b32.xlu0 %v624, 64
          %v633 = vpop.permute.xlu0 %632
          %v635 = vmul.f32 %v623, %v633
          %637 = vrot.lane.b32.xlu0 %v635, 32
          %v638 = vpop.permute.xlu0 %637
          %v640 = vadd.f32 %v630, %v638
          %v641 = vtanh.pop %v640
          %643 = vrot.lane.b32.xlu0 %v641, 64
          %v644 = vpop.permute.xlu0 %643
          %v646 = vmul.f32 %v623, %v644
          %648 = vrot.lane.b32.xlu0 %v640, 96
          %v649 = vpop.permute.xlu0 %648
          %vm651 = vcmask 261120
          %652 = vst.msk [vmem:[#allocation9] sm:$0xff] %vm651, %v649
          %654 = vrot.lane.b32.xlu0 %v646, 32
          %v655 = vpop.permute.xlu0 %654
          %657 = vst.msk [vmem:[#allocation8] sm:$0xff] %vm651, %v655
        $region68: #{_lstm_cell_fwd.1} parent=43 // pred_fallthru
          _
        // Predicated region
        $region69: #{_lstm_cell_fwd.1} parent=43 // pred_check
          %p658 = pneg %p250
        $region70: #{_lstm_cell_fwd.1} parent=43 // pred_check_branch
          %660 = sbr.rel (%p658) target = $region72
        $region71: #{_lstm_cell_fwd.1} parent=43 // pred_region
          %662 = vsyncadd [#allocation5], 0
          %s663 = sadd.s32 %s30, %s31
          %s664 = smul.addr %s663, 8
          %s665 = scalar_lea.hbm %s6, %s664
          %s667 = sshll.u32 [#allocation8], 4
          %s668 = int_to_ptr.vmem [resolvable:$true] %s667
          %s669 = sshll.u32 %s665, 4
          %s670 = int_to_ptr.hbm [resolvable:$true] %s669
          %672 = dma.vmem_to_hbm [thread:$0]  %s668, 128, %s670, [#allocation5]
        $region72: #{_lstm_cell_fwd.1} parent=43 // pred_fallthru
          _
        // Predicated region
        $region73: #{_lstm_cell_fwd.1} parent=43 // pred_check
          %p673 = pneg %p278
        $region74: #{_lstm_cell_fwd.1} parent=43 // pred_check_branch
          %675 = sbr.rel (%p673) target = $region76
        $region75: #{_lstm_cell_fwd.1} parent=43 // pred_region
          %677 = vsyncadd [#allocation10], 0
          %s678 = sadd.s32 %s30, %s31
          %s679 = smul.addr %s678, 8
          %s680 = scalar_lea.hbm %s7, %s679
          %s682 = sshll.u32 [#allocation9], 4
          %s683 = int_to_ptr.vmem [resolvable:$true] %s682
          %s684 = sshll.u32 %s680, 4
          %s685 = int_to_ptr.hbm [resolvable:$true] %s684
          %687 = dma.vmem_to_hbm [thread:$0]  %s683, 128, %s685, [#allocation10]
        $region76: #{_lstm_cell_fwd.1} parent=43 // pred_fallthru
          _
        // Predicated region
        $region77: #{_lstm_cell_fwd.1} parent=43 // pred_check
          %p688 = pneg %p250
        $region78: #{_lstm_cell_fwd.1} parent=43 // pred_check_branch
          %690 = sbr.rel (%p688) target = $region80
        $region79: #{_lstm_cell_fwd.1} parent=43 // pred_region
          %692 = dma.done [#allocation5], 128
        $region80: #{_lstm_cell_fwd.1} parent=43 // pred_fallthru
          _
        // Predicated region
        $region81: #{_lstm_cell_fwd.1} parent=43 // pred_check
          %p693 = pneg %p278
        $region82: #{_lstm_cell_fwd.1} parent=43 // pred_check_branch
          %695 = sbr.rel (%p693) target = $region84
        $region83: #{_lstm_cell_fwd.1} parent=43 // pred_region
          %697 = dma.done [#allocation10], 128
        $region84: #{_lstm_cell_fwd.1} parent=43 // pred_fallthru
          _
      $region44: #{_lstm_cell_fwd.1} parent=5 // pred_fallthru
        _
      %p698 = scmp.le.s32.totalorder 2, %s20
      // Predicated region
      $region85: #{_lstm_cell_fwd.1} parent=5 // pred_check
        %p699 = pneg %p698
      $region86: #{_lstm_cell_fwd.1} parent=5 // pred_check_branch
        %701 = sbr.rel (%p699) target = $region88
      $region87: #{_lstm_cell_fwd.1} parent=5 // pred_region
        %s702 = ssub.s32 %s20, 2
      $region88: #{_lstm_cell_fwd.1} parent=5 // pred_fallthru
        _
    $region6: #{_lstm_cell_fwd.1} parent=1 // loop_footer
      %s24 = sadd.s32 1, %s20
    $region7: #{_lstm_cell_fwd.1} parent=1 // loop_footer_branch
      %19 = sbr.rel target = $region3
    $region8: #{_lstm_cell_fwd.1} parent=1 // loop_exit
      _
    %703 = vsyncpa [#allocation4], 1
    %s704 = scalar_lea.sflag [#allocation4], 1
    %705 = vsyncpa %s704, 1
    %706 = vsyncpa [#allocation7], 1
    %s707 = scalar_lea.sflag [#allocation7], 1
    %708 = vsyncpa %s707, 1
    %709 = vsyncpa [#allocation5], 1
    %s710 = scalar_lea.sflag [#allocation5], 1
    %711 = vsyncpa %s710, 1
    %712 = vsyncpa [#allocation10], 1

</llo_original>
